<compile_context>
chip_gen: v5e
topology: v5e:2x2
jax: 0.10.0
libtpu: 0.0.40
codegen_flags: <defaults>
</compile_context>

<pallas_src>
import jax
import jax.numpy as jnp
from jax.experimental import pallas as pl
from jax.experimental.pallas import tpu as pltpu


def _activation_fn(name):
    if name == 'relu':
        return lambda h: jnp.maximum(h, 0.0)
    if name == 'sigmoid':
        return jax.nn.sigmoid
    if name == 'tanh':
        return jnp.tanh
    raise ValueError(f"unknown activation: {name}")


def _round_up(x, m):
    return ((x + m - 1) // m) * m


def _resident_spec(shape):
    """Full-extent block, same tile every grid step -> DMA'd once, stays in VMEM."""
    nd = len(shape)
    return pl.BlockSpec(shape, lambda i, _nd=nd: (0,) * _nd)


def _make_mlp_kernel(n_linear, activation):
    act = _activation_fn(activation)

    def kernel(x_ref, *refs):
        # refs = (w0, b0, ..., w_{L-2}, b_{L-2}, wT_last, bT_last, out)
        *param_refs, o_ref = refs
        # f32 tile read from HBM, cast to bf16 on the VPU for the MXU path.
        h = x_ref[...].astype(jnp.bfloat16)                    # (tb, fan_in)
        for li in range(n_linear - 1):
            w = param_refs[2 * li][...]                        # bf16 (fan_in, fan_out)
            b = param_refs[2 * li + 1][...]                    # f32  (1, fan_out)
            y = jnp.dot(h, w, preferred_element_type=jnp.float32) + b
            h = act(y).astype(jnp.bfloat16)                    # f32 elementwise, bf16 to MXU
        # Last Linear, computed transposed so the batch ends on the lane axis:
        #   yT[o, b] = sum_d wT[o, d] * h[b, d]   (q @ k.T contraction pattern)
        wT = param_refs[2 * (n_linear - 1)][...]               # bf16 (out_dim, fan_in)
        bT = param_refs[2 * (n_linear - 1) + 1][...]           # f32  (out_dim, 1)
        yT = jax.lax.dot_general(
            wT, h, dimension_numbers=(((1,), (1,)), ((), ())),
            preferred_element_type=jnp.float32) + bT           # (out_dim, tb) f32
        o_ref[...] = yT.astype(o_ref.dtype)

    return kernel


def general_neuralnet_forward(x, weights, biases, activation='relu', block_batch=1024):
    """x: [B, in_features] f32. weights[i]: [fan_in_i, fan_out_i]. biases[i]: [1, fan_out_i].
    Returns [B, num_outputs] f32."""
    n_linear = len(weights)
    B, in_features = x.shape
    out_dim = weights[-1].shape[1]

    # ---- params: hidden layers as-is (bf16 weights, f32 biases); last layer
    #      pre-transposed (tiny one-time op) for the lane-dense packed output ----
    flat_params = []
    for w, b in zip(weights[:-1], biases[:-1]):
        flat_params.append(jnp.asarray(w, jnp.bfloat16))
        flat_params.append(jnp.asarray(b, jnp.float32).reshape(1, -1))
    flat_params.append(jnp.asarray(weights[-1], jnp.bfloat16).T)             # (out_dim, fan_in)
    flat_params.append(jnp.asarray(biases[-1], jnp.float32).reshape(-1, 1))  # (out_dim, 1)

    # ---- batch tile: multiple of 128 (bf16 sublane packing + lane-dense output),
    #      large to amortize per-step overhead, capped at ~ceil(B/2) so the grid
    #      has >= 2 steps (keeps both v7x TensorCores busy). ----
    tb_cap = max(128, _round_up(min(block_batch, 2048), 128))
    tb = max(128, min(tb_cap, _round_up(-(-B // 2), 128)))
    b_pad = _round_up(B, tb)
    grid = (b_pad // tb,)

    x_in = jnp.asarray(x, jnp.float32)
    if b_pad != B:
        # Only the ragged tail is padded; there is no full bf16 pre-cast pass over x.
        x_in = jnp.pad(x_in, ((0, b_pad - B), (0, 0)))

    kernel = _make_mlp_kernel(n_linear, activation)

    in_specs = [pl.BlockSpec((tb, in_features), lambda i: (i, 0))]
    in_specs += [_resident_spec(p.shape) for p in flat_params]
    out_specs = pl.BlockSpec((out_dim, tb), lambda i: (0, i))
    out_shape = jax.ShapeDtypeStruct((out_dim, b_pad), jnp.float32)

    # ---- advisory cost estimate + explicit VMEM budget ----
    flops = 2 * b_pad * sum(int(w.shape[0]) * int(w.shape[1]) for w in weights)
    transcendentals = 0 if activation == 'relu' else \
        b_pad * sum(int(w.shape[1]) for w in weights[:-1])
    param_bytes = sum(int(p.size) * p.dtype.itemsize for p in flat_params)
    bytes_accessed = int(x_in.size) * 4 + param_bytes + out_dim * b_pad * 4
    stream_bytes = 2 * (tb * in_features * 4) + 2 * (out_dim * tb * 4)  # double-buffered x/out
    vmem_limit = int(min(64 << 20, max(8 << 20, 2 * (2 * param_bytes + stream_bytes))))

    out = pl.pallas_call(
        kernel,
        out_shape=out_shape,
        grid=grid,
        in_specs=in_specs,
        out_specs=out_specs,
        compiler_params=pltpu.CompilerParams(
            dimension_semantics=("parallel",),
            vmem_limit_bytes=vmem_limit),
        cost_estimate=pl.CostEstimate(
            flops=int(flops),
            transcendentals=int(transcendentals),
            bytes_accessed=int(bytes_accessed)),
    )(x_in, *flat_params)

    return out[:, :B].T                                        # (B, out_dim) f32


def init_params(key, in_features, num_layers, units_layer, num_outputs=1):
    """Deterministic init mirroring nn.Linear's U(-1/sqrt(fan_in), 1/sqrt(fan_in))."""
    if num_layers == 0:
        dims = [(in_features, num_outputs)]
    else:
        dims = [(in_features, units_layer)]
        dims += [(units_layer, units_layer)] * (num_layers - 1)
        dims += [(units_layer, num_outputs)]

    weights, biases = [], []
    for (fan_in, fan_out) in dims:
        key, kw, kb = jax.random.split(key, 3)
        bound = 1.0 / jnp.sqrt(jnp.float32(fan_in))
        w = jax.random.uniform(kw, (fan_in, fan_out), jnp.float32, -bound, bound)
        b = jax.random.uniform(kb, (1, fan_out), jnp.float32, -bound, bound)
        weights.append(w)
        biases.append(b)
    return weights, biases


if __name__ == "__main__":
    # Module config analogue:
    #   in_features=32, model_specification={'num_layers': 2, 'activation': 'relu'},
    #   units_layer=32  ->  Linear(32,32) ReLU Linear(32,32) ReLU Linear(32,1)
    in_features = 32
    num_layers = 2
    units_layer = 32
    activation = 'relu'
    batch = 200          # ragged batch: exercises tail padding + a 2-step grid

    key = jax.random.PRNGKey(0)
    key, kx = jax.random.split(key)
    x = jax.random.normal(kx, (batch, in_features), jnp.float32)

    weights, biases = init_params(key, in_features, num_layers, units_layer)

    out = general_neuralnet_forward(x, weights, biases, activation)
    out = jax.block_until_ready(out)

    # Pure-JAX reference mirroring the kernel's bf16-matmul / f32-accumulate math.
    act = _activation_fn(activation)
    h = x.astype(jnp.bfloat16)
    for i, (w, b) in enumerate(zip(weights, biases)):
        y = jnp.dot(h, w.astype(jnp.bfloat16),
                    preferred_element_type=jnp.float32) + b.astype(jnp.float32)
        h = act(y).astype(jnp.bfloat16) if i < len(weights) - 1 else y
    ref = h

    assert out.shape == (batch, 1)
    assert jnp.allclose(out, ref, atol=2e-3, rtol=2e-3), \
        float(jnp.max(jnp.abs(out - ref)))

    print("KERNEL_OK")
</pallas_src>

<mosaic_0001>
module attributes {stable_mosaic.version = 11 : i64} {
  func.func @kernel(%arg0: i32, %arg1: memref<128x32xf32, #tpu.memory_space<vmem>>, %arg2: memref<32x32xbf16, #tpu.memory_space<vmem>>, %arg3: memref<1x32xf32, #tpu.memory_space<vmem>>, %arg4: memref<32x32xbf16, #tpu.memory_space<vmem>>, %arg5: memref<1x32xf32, #tpu.memory_space<vmem>>, %arg6: memref<1x32xbf16, #tpu.memory_space<vmem>>, %arg7: memref<1x1xf32, #tpu.memory_space<vmem>>, %arg8: memref<1x128xf32, #tpu.memory_space<vmem>>) attributes {dimension_semantics = [#tpu.dimension_semantics<parallel>], iteration_bounds = array<i64: 2>, scalar_prefetch = 0 : i64, scratch_operands = 0 : i64, tpu.core_type = #tpu.core_type<tc>, window_params = [{transform_indices = @transform_0, window_bounds = array<i64: 128, 32>}, {pipeline_mode = #tpu.pipeline_mode<synchronous>, transform_indices = @transform_1, window_bounds = array<i64: 32, 32>}, {pipeline_mode = #tpu.pipeline_mode<synchronous>, transform_indices = @transform_2, window_bounds = array<i64: 1, 32>}, {pipeline_mode = #tpu.pipeline_mode<synchronous>, transform_indices = @transform_3, window_bounds = array<i64: 32, 32>}, {pipeline_mode = #tpu.pipeline_mode<synchronous>, transform_indices = @transform_4, window_bounds = array<i64: 1, 32>}, {pipeline_mode = #tpu.pipeline_mode<synchronous>, transform_indices = @transform_5, window_bounds = array<i64: 1, 32>}, {pipeline_mode = #tpu.pipeline_mode<synchronous>, transform_indices = @transform_6, window_bounds = array<i64: 1, 1>}, {transform_indices = @transform_7, window_bounds = array<i64: 1, 128>}]} {
    %c0 = arith.constant 0 : index
    %c0_0 = arith.constant 0 : index
    %0 = vector.load %arg1[%c0, %c0_0] : memref<128x32xf32, #tpu.memory_space<vmem>>, vector<128x32xf32>
    %1 = arith.truncf %0 : vector<128x32xf32> to vector<128x32xbf16>
    %c0_1 = arith.constant 0 : index
    %c0_2 = arith.constant 0 : index
    %2 = vector.load %arg2[%c0_1, %c0_2] : memref<32x32xbf16, #tpu.memory_space<vmem>>, vector<32x32xbf16>
    %c0_3 = arith.constant 0 : index
    %c0_4 = arith.constant 0 : index
    %3 = vector.load %arg3[%c0_3, %c0_4] : memref<1x32xf32, #tpu.memory_space<vmem>>, vector<1x32xf32>
    %cst = arith.constant dense<0.000000e+00> : vector<128x32xf32>
    %4 = tpu.matmul %1, %2, %cst {dimension_numbers = #tpu.dot_dimension_numbers<[1], [0], [0], [1], [0, 0, 1, 1], [], []>} : vector<128x32xbf16>, vector<32x32xbf16>, vector<128x32xf32> -> vector<128x32xf32>
    %5 = vector.broadcast %3 : vector<1x32xf32> to vector<128x32xf32>
    %6 = arith.addf %4, %5 : vector<128x32xf32>
    %cst_5 = arith.constant 0.000000e+00 : f32
    %7 = vector.broadcast %cst_5 : f32 to vector<128x32xf32>
    %8 = arith.maximumf %6, %7 : vector<128x32xf32>
    %9 = arith.truncf %8 : vector<128x32xf32> to vector<128x32xbf16>
    %c0_6 = arith.constant 0 : index
    %c0_7 = arith.constant 0 : index
    %10 = vector.load %arg4[%c0_6, %c0_7] : memref<32x32xbf16, #tpu.memory_space<vmem>>, vector<32x32xbf16>
    %c0_8 = arith.constant 0 : index
    %c0_9 = arith.constant 0 : index
    %11 = vector.load %arg5[%c0_8, %c0_9] : memref<1x32xf32, #tpu.memory_space<vmem>>, vector<1x32xf32>
    %cst_10 = arith.constant dense<0.000000e+00> : vector<128x32xf32>
    %12 = tpu.matmul %9, %10, %cst_10 {dimension_numbers = #tpu.dot_dimension_numbers<[1], [0], [0], [1], [0, 0, 1, 1], [], []>} : vector<128x32xbf16>, vector<32x32xbf16>, vector<128x32xf32> -> vector<128x32xf32>
    %13 = vector.broadcast %11 : vector<1x32xf32> to vector<128x32xf32>
    %14 = arith.addf %12, %13 : vector<128x32xf32>
    %cst_11 = arith.constant 0.000000e+00 : f32
    %15 = vector.broadcast %cst_11 : f32 to vector<128x32xf32>
    %16 = arith.maximumf %14, %15 : vector<128x32xf32>
    %17 = arith.truncf %16 : vector<128x32xf32> to vector<128x32xbf16>
    %c0_12 = arith.constant 0 : index
    %c0_13 = arith.constant 0 : index
    %18 = vector.load %arg6[%c0_12, %c0_13] : memref<1x32xbf16, #tpu.memory_space<vmem>>, vector<1x32xbf16>
    %c0_14 = arith.constant 0 : index
    %c0_15 = arith.constant 0 : index
    %19 = vector.load %arg7[%c0_14, %c0_15] : memref<1x1xf32, #tpu.memory_space<vmem>>, vector<1x1xf32>
    %cst_16 = arith.constant dense<0.000000e+00> : vector<1x128xf32>
    %20 = tpu.matmul %18, %17, %cst_16 {dimension_numbers = #tpu.dot_dimension_numbers<[1], [1], [0], [0], [0, 0, 1, 0], [], []>} : vector<1x32xbf16>, vector<128x32xbf16>, vector<1x128xf32> -> vector<1x128xf32>
    %21 = vector.broadcast %19 : vector<1x1xf32> to vector<1x128xf32>
    %22 = arith.addf %20, %21 : vector<1x128xf32>
    %c0_17 = arith.constant 0 : index
    %c0_18 = arith.constant 0 : index
    %23 = vector.load %arg8[%c0_17, %c0_18] : memref<1x128xf32, #tpu.memory_space<vmem>>, vector<1x128xf32>
    tpu.vector_store %arg8[%c0_17, %c0_18], %22 {strides = array<i32>} : memref<1x128xf32, #tpu.memory_space<vmem>>, vector<1x128xf32>,
    return
  }
  func.func @transform_0(%arg0: i32) -> (i32, i32) {
    %c0_i32 = arith.constant 0 : i32
    %c0_i32_0 = arith.constant 0 : i32
    return %arg0, %c0_i32 : i32, i32
  }
  func.func @transform_1(%arg0: i32) -> (i32, i32) {
    %c0_i32 = arith.constant 0 : i32
    %c0_i32_0 = arith.constant 0 : i32
    %c0_i32_1 = arith.constant 0 : i32
    return %c0_i32, %c0_i32_0 : i32, i32
  }
  func.func @transform_2(%arg0: i32) -> (i32, i32) {
    %c0_i32 = arith.constant 0 : i32
    %c0_i32_0 = arith.constant 0 : i32
    %c0_i32_1 = arith.constant 0 : i32
    return %c0_i32, %c0_i32_0 : i32, i32
  }
  func.func @transform_3(%arg0: i32) -> (i32, i32) {
    %c0_i32 = arith.constant 0 : i32
    %c0_i32_0 = arith.constant 0 : i32
    %c0_i32_1 = arith.constant 0 : i32
    return %c0_i32, %c0_i32_0 : i32, i32
  }
  func.func @transform_4(%arg0: i32) -> (i32, i32) {
    %c0_i32 = arith.constant 0 : i32
    %c0_i32_0 = arith.constant 0 : i32
    %c0_i32_1 = arith.constant 0 : i32
    return %c0_i32, %c0_i32_0 : i32, i32
  }
  func.func @transform_5(%arg0: i32) -> (i32, i32) {
    %c0_i32 = arith.constant 0 : i32
    %c0_i32_0 = arith.constant 0 : i32
    %c0_i32_1 = arith.constant 0 : i32
    return %c0_i32, %c0_i32_0 : i32, i32
  }
  func.func @transform_6(%arg0: i32) -> (i32, i32) {
    %c0_i32 = arith.constant 0 : i32
    %c0_i32_0 = arith.constant 0 : i32
    %c0_i32_1 = arith.constant 0 : i32
    return %c0_i32, %c0_i32_0 : i32, i32
  }
  func.func @transform_7(%arg0: i32) -> (i32, i32) {
    %c0_i32 = arith.constant 0 : i32
    %c0_i32_0 = arith.constant 0 : i32
    return %c0_i32, %arg0 : i32, i32
  }
}

</mosaic_0001>

<llo_original>
// kernel: tpu_custom_call.1
$region0: #{tpu_custom_call.1}
  #allocation0 [shape = 'u32[]', space=smem, size = 0x4, offset = 0x4, fixed_abs, tag = 'smem constant byte address 0x4 - core index']
  #allocation1 [shape = 'u32[72,128]{1,0:T(1,128)}', space=vmem, size = 0x9000, scoped, tag = 'internal scratch']
  #allocation2 [shape = 'f32[1,1]{1,0:T(1,128)S(1)}', space=vmem, size = 0x200, scoped, tag = 'scoped memory for tpu_custom_call.1']
  %s0 = inlined_call_operand.vmem [shape: f32[256,32], index: 0, kind: input, shape index: {}]
  %s1 = inlined_call_operand.vmem [shape: bf16[32,32], index: 1, kind: input, shape index: {}]
  %s2 = inlined_call_operand.vmem [shape: f32[1,32], index: 2, kind: input, shape index: {}]
  %s3 = inlined_call_operand.vmem [shape: bf16[32,32], index: 3, kind: input, shape index: {}]
  %s4 = inlined_call_operand.vmem [shape: f32[1,32], index: 4, kind: input, shape index: {}]
  %s5 = inlined_call_operand.vmem [shape: bf16[1,32], index: 5, kind: input, shape index: {}]
  %s6 = inlined_call_operand.<no memory space> [shape: f32[1,1], index: 6, kind: input, shape index: {}]
  %s7 = inlined_call_operand.hbm [shape: f32[1,256], index: 7, kind: output, shape index: {}]
  %s8 = sld [smem:[#allocation0]]
  $region61: #{tpu_custom_call.1} parent=0
    _
  %s10 = ssub.s32 1, %s8
  %s11 = scalar_select 0, %s10, %s8
  %v12 = vstv %s6
  %13 = vst [vmem:[#allocation2] sm:$0x1] %v12
  $region1: #{tpu_custom_call.1} parent=0
    #allocation3 [shape = 'u8[1024]{0}', space=vmem, size = 0x400, scoped, tag = 'output window, operand 0']
    #allocation4 [shape = 's32[2]{0}', space=sflag, size = 0x8, scoped, tag = 'scoped memory for tpu_custom_call.1']
    %14 = vsyncpa [#allocation4], 0
    %s15 = scalar_lea.sflag [#allocation4], 1
    %16 = vsyncpa %s15, 0
    loop: start=0, step=1, limit=4
    $region2: #{tpu_custom_call.1} parent=1 // loop_pre_header
      _
    $region3: #{tpu_custom_call.1} parent=1 // loop_header
      %s18 = sphi 0, %s22
      %p19 = scmp.ge.s32.totalorder %s18, 4
      %s28 = sphi 0, %s30
      %s31 = sphi 0, %s28
      %s32 = sphi 0, %s31
      %s48 = sphi 0, %s32
      %s52 = sphi 0, %s52
      %s54 = sphi 0, %s52
      %s55 = sphi 0, %s54
      %s69 = sphi 0, %s55
      %s73 = sphi 0, %s73
      %s75 = sphi 0, %s73
      %s76 = sphi 0, %s75
      %s90 = sphi 0, %s76
      %s94 = sphi 0, %s94
      %s96 = sphi 0, %s94
      %s97 = sphi 0, %s96
      %s111 = sphi 0, %s97
      %s115 = sphi 0, %s115
      %s117 = sphi 0, %s115
      %s118 = sphi 0, %s117
      %s132 = sphi 0, %s118
      %s136 = sphi 0, %s136
      %s138 = sphi 0, %s136
      %s139 = sphi 0, %s138
      %s153 = sphi 0, %s139
      %s157 = sphi 0, %s157
      %s159 = sphi 0, %s157
      %s160 = sphi 0, %s159
      %s174 = sphi 0, %s160
      %s180 = sphi 0, %s182
      %s183 = sphi 0, %s180
      %s184 = sphi 0, %s183
      %s200 = sphi 0, %s184
    $region4: #{tpu_custom_call.1} parent=1 // loop_header_branch
      %21 = sbr.rel (%p19) target = $region8
    $region5: #{tpu_custom_call.1} parent=1 // loop_body
      %s23 = ssub.s32 %s18, 1
      %s24 = ssub.s32 %s18, 2
      %s25 = sadd.s32 %s18, 1
      %s26 = ssub.s32 %s18, %s25
      %p27 = scmp.eq.s32.totalorder %s26, 0
      %s29 = sadd.s32 %s28, 1
      %s30 = scalar_select %p27, %s28, %s29
      %p33 = pneg %p27
      %p34 = scmp.eq.s32.totalorder %s18, 1
      %p35 = por %p33, %p34
      %p36 = scmp.ne.s32.totalorder %s28, %s31
      %p37 = scmp.eq.s32.totalorder %s18, 0
      %p38 = por %p36, %p37
      %p39 = scmp.ne.s32.totalorder %s28, %s31
      %p40 = scmp.eq.s32.totalorder %s23, 1
      %p41 = por %p39, %p40
      %p42 = scmp.ne.s32.totalorder %s31, %s32
      %p43 = scmp.eq.s32.totalorder %s23, 0
      %p44 = por %p42, %p43
      %p45 = scmp.ne.s32.totalorder %s31, %s32
      %p46 = scmp.eq.s32.totalorder %s24, 1
      %p47 = por %p45, %p46
      %p49 = scmp.ne.s32.totalorder %s32, %s48
      %p50 = scmp.eq.s32.totalorder %s24, 0
      %p51 = por %p49, %p50
      %s53 = sadd.s32 %s52, 1
      %p56 = scmp.eq.s32.totalorder %s18, 1
      %p57 = scmp.ne.s32.totalorder %s52, %s54
      %p58 = scmp.eq.s32.totalorder %s18, 0
      %p59 = por %p57, %p58
      %p60 = scmp.ne.s32.totalorder %s52, %s54
      %p61 = scmp.eq.s32.totalorder %s23, 1
      %p62 = por %p60, %p61
      %p63 = scmp.ne.s32.totalorder %s54, %s55
      %p64 = scmp.eq.s32.totalorder %s23, 0
      %p65 = por %p63, %p64
      %p66 = scmp.ne.s32.totalorder %s54, %s55
      %p67 = scmp.eq.s32.totalorder %s24, 1
      %p68 = por %p66, %p67
      %p70 = scmp.ne.s32.totalorder %s55, %s69
      %p71 = scmp.eq.s32.totalorder %s24, 0
      %p72 = por %p70, %p71
      %s74 = sadd.s32 %s73, 1
      %p77 = scmp.eq.s32.totalorder %s18, 1
      %p78 = scmp.ne.s32.totalorder %s73, %s75
      %p79 = scmp.eq.s32.totalorder %s18, 0
      %p80 = por %p78, %p79
      %p81 = scmp.ne.s32.totalorder %s73, %s75
      %p82 = scmp.eq.s32.totalorder %s23, 1
      %p83 = por %p81, %p82
      %p84 = scmp.ne.s32.totalorder %s75, %s76
      %p85 = scmp.eq.s32.totalorder %s23, 0
      %p86 = por %p84, %p85
      %p87 = scmp.ne.s32.totalorder %s75, %s76
      %p88 = scmp.eq.s32.totalorder %s24, 1
      %p89 = por %p87, %p88
      %p91 = scmp.ne.s32.totalorder %s76, %s90
      %p92 = scmp.eq.s32.totalorder %s24, 0
      %p93 = por %p91, %p92
      %s95 = sadd.s32 %s94, 1
      %p98 = scmp.eq.s32.totalorder %s18, 1
      %p99 = scmp.ne.s32.totalorder %s94, %s96
      %p100 = scmp.eq.s32.totalorder %s18, 0
      %p101 = por %p99, %p100
      %p102 = scmp.ne.s32.totalorder %s94, %s96
      %p103 = scmp.eq.s32.totalorder %s23, 1
      %p104 = por %p102, %p103
      %p105 = scmp.ne.s32.totalorder %s96, %s97
      %p106 = scmp.eq.s32.totalorder %s23, 0
      %p107 = por %p105, %p106
      %p108 = scmp.ne.s32.totalorder %s96, %s97
      %p109 = scmp.eq.s32.totalorder %s24, 1
      %p110 = por %p108, %p109
      %p112 = scmp.ne.s32.totalorder %s97, %s111
      %p113 = scmp.eq.s32.totalorder %s24, 0
      %p114 = por %p112, %p113
      %s116 = sadd.s32 %s115, 1
      %p119 = scmp.eq.s32.totalorder %s18, 1
      %p120 = scmp.ne.s32.totalorder %s115, %s117
      %p121 = scmp.eq.s32.totalorder %s18, 0
      %p122 = por %p120, %p121
      %p123 = scmp.ne.s32.totalorder %s115, %s117
      %p124 = scmp.eq.s32.totalorder %s23, 1
      %p125 = por %p123, %p124
      %p126 = scmp.ne.s32.totalorder %s117, %s118
      %p127 = scmp.eq.s32.totalorder %s23, 0
      %p128 = por %p126, %p127
      %p129 = scmp.ne.s32.totalorder %s117, %s118
      %p130 = scmp.eq.s32.totalorder %s24, 1
      %p131 = por %p129, %p130
      %p133 = scmp.ne.s32.totalorder %s118, %s132
      %p134 = scmp.eq.s32.totalorder %s24, 0
      %p135 = por %p133, %p134
      %s137 = sadd.s32 %s136, 1
      %p140 = scmp.eq.s32.totalorder %s18, 1
      %p141 = scmp.ne.s32.totalorder %s136, %s138
      %p142 = scmp.eq.s32.totalorder %s18, 0
      %p143 = por %p141, %p142
      %p144 = scmp.ne.s32.totalorder %s136, %s138
      %p145 = scmp.eq.s32.totalorder %s23, 1
      %p146 = por %p144, %p145
      %p147 = scmp.ne.s32.totalorder %s138, %s139
      %p148 = scmp.eq.s32.totalorder %s23, 0
      %p149 = por %p147, %p148
      %p150 = scmp.ne.s32.totalorder %s138, %s139
      %p151 = scmp.eq.s32.totalorder %s24, 1
      %p152 = por %p150, %p151
      %p154 = scmp.ne.s32.totalorder %s139, %s153
      %p155 = scmp.eq.s32.totalorder %s24, 0
      %p156 = por %p154, %p155
      %s158 = sadd.s32 %s157, 1
      %p161 = scmp.eq.s32.totalorder %s18, 1
      %p162 = scmp.ne.s32.totalorder %s157, %s159
      %p163 = scmp.eq.s32.totalorder %s18, 0
      %p164 = por %p162, %p163
      %p165 = scmp.ne.s32.totalorder %s157, %s159
      %p166 = scmp.eq.s32.totalorder %s23, 1
      %p167 = por %p165, %p166
      %p168 = scmp.ne.s32.totalorder %s159, %s160
      %p169 = scmp.eq.s32.totalorder %s23, 0
      %p170 = por %p168, %p169
      %p171 = scmp.ne.s32.totalorder %s159, %s160
      %p172 = scmp.eq.s32.totalorder %s24, 1
      %p173 = por %p171, %p172
      %p175 = scmp.ne.s32.totalorder %s160, %s174
      %p176 = scmp.eq.s32.totalorder %s24, 0
      %p177 = por %p175, %p176
      %s178 = ssub.s32 %s18, %s25
      %p179 = scmp.eq.s32.totalorder %s178, 0
      %s181 = sadd.s32 %s180, 1
      %s182 = scalar_select %p179, %s180, %s181
      %p185 = pneg %p179
      %p186 = scmp.eq.s32.totalorder %s18, 1
      %p187 = por %p185, %p186
      %p188 = scmp.ne.s32.totalorder %s180, %s183
      %p189 = scmp.eq.s32.totalorder %s18, 0
      %p190 = por %p188, %p189
      %p191 = scmp.ne.s32.totalorder %s180, %s183
      %p192 = scmp.eq.s32.totalorder %s23, 1
      %p193 = por %p191, %p192
      %p194 = scmp.ne.s32.totalorder %s183, %s184
      %p195 = scmp.eq.s32.totalorder %s23, 0
      %p196 = por %p194, %p195
      %p197 = scmp.ne.s32.totalorder %s183, %s184
      %p198 = scmp.eq.s32.totalorder %s24, 1
      %p199 = por %p197, %p198
      %p201 = scmp.ne.s32.totalorder %s184, %s200
      %p202 = scmp.eq.s32.totalorder %s24, 0
      %p203 = por %p201, %p202
      %p204 = scmp.le.s32.totalorder 1, %s18
      %p205 = scmp.lt.s32.totalorder %s18, 3
      %p206 = pnand %p204, %p205
      %p207 = pneg %p206
      // Predicated region
      $region9: #{tpu_custom_call.1} parent=5 // pred_check
        _
      $region10: #{tpu_custom_call.1} parent=5 // pred_check_branch
        %209 = sbr.rel (%p206) target = $region12
      $region11: #{tpu_custom_call.1} parent=5 // pred_region
        %s210 = ssub.s32 %s18, 1
        // Predicated region
        $region13: #{tpu_custom_call.1} parent=11 // pred_check
          %p211 = pneg %p65
        $region14: #{tpu_custom_call.1} parent=11 // pred_check_branch
          %213 = sbr.rel (%p211) target = $region16
        $region15: #{tpu_custom_call.1} parent=11 // pred_region
          _
        $region16: #{tpu_custom_call.1} parent=11 // pred_fallthru
          _
        // Predicated region
        $region17: #{tpu_custom_call.1} parent=11 // pred_check
          %p214 = pneg %p86
        $region18: #{tpu_custom_call.1} parent=11 // pred_check_branch
          %216 = sbr.rel (%p214) target = $region20
        $region19: #{tpu_custom_call.1} parent=11 // pred_region
          _
        $region20: #{tpu_custom_call.1} parent=11 // pred_fallthru
          _
        // Predicated region
        $region21: #{tpu_custom_call.1} parent=11 // pred_check
          %p217 = pneg %p107
        $region22: #{tpu_custom_call.1} parent=11 // pred_check_branch
          %219 = sbr.rel (%p217) target = $region24
        $region23: #{tpu_custom_call.1} parent=11 // pred_region
          _
        $region24: #{tpu_custom_call.1} parent=11 // pred_fallthru
          _
        // Predicated region
        $region25: #{tpu_custom_call.1} parent=11 // pred_check
          %p220 = pneg %p128
        $region26: #{tpu_custom_call.1} parent=11 // pred_check_branch
          %222 = sbr.rel (%p220) target = $region28
        $region27: #{tpu_custom_call.1} parent=11 // pred_region
          _
        $region28: #{tpu_custom_call.1} parent=11 // pred_fallthru
          _
        // Predicated region
        $region29: #{tpu_custom_call.1} parent=11 // pred_check
          %p223 = pneg %p149
        $region30: #{tpu_custom_call.1} parent=11 // pred_check_branch
          %225 = sbr.rel (%p223) target = $region32
        $region31: #{tpu_custom_call.1} parent=11 // pred_region
          _
        $region32: #{tpu_custom_call.1} parent=11 // pred_fallthru
          _
        // Predicated region
        $region33: #{tpu_custom_call.1} parent=11 // pred_check
          %p226 = pneg %p170
        $region34: #{tpu_custom_call.1} parent=11 // pred_check_branch
          %228 = sbr.rel (%p226) target = $region36
        $region35: #{tpu_custom_call.1} parent=11 // pred_region
          _
        $region36: #{tpu_custom_call.1} parent=11 // pred_fallthru
          _
      $region12: #{tpu_custom_call.1} parent=5 // pred_fallthru
        _
      %p229 = scmp.lt.s32.totalorder %s18, 2
      // Predicated region
      $region37: #{tpu_custom_call.1} parent=5 // pred_check
        %p230 = pneg %p229
      $region38: #{tpu_custom_call.1} parent=5 // pred_check_branch
        %232 = sbr.rel (%p230) target = $region40
      $region39: #{tpu_custom_call.1} parent=5 // pred_region
        // Predicated region
        $region41: #{tpu_custom_call.1} parent=39 // pred_check
          %p233 = pneg %p38
        $region42: #{tpu_custom_call.1} parent=39 // pred_check_branch
          %235 = sbr.rel (%p233) target = $region44
        $region43: #{tpu_custom_call.1} parent=39 // pred_region
          %s236 = smul.u32 16, %s18
          %p237 = scmp.lt.s32.totalorder %s236, 31
          %s238 = scalar_select %p237, %s236, 31
          %s239 = smul.addr %s238, 8
          %s240 = scalar_lea.vmem %s0, %s239
          %s241 = smul.u32 16, %s18
        $region44: #{tpu_custom_call.1} parent=39 // pred_fallthru
          _
      $region40: #{tpu_custom_call.1} parent=5 // pred_fallthru
        _
      %p242 = scmp.le.s32.totalorder 1, %s18
      %p243 = scmp.lt.s32.totalorder %s18, 3
      %p244 = pnand %p242, %p243
      %p245 = pneg %p244
      // Predicated region
      $region45: #{tpu_custom_call.1} parent=5 // pred_check
        _
      $region46: #{tpu_custom_call.1} parent=5 // pred_check_branch
        %247 = sbr.rel (%p244) target = $region48
      $region47: #{tpu_custom_call.1} parent=5 // pred_region
        %s248 = ssub.s32 %s18, 1
        %s249 = smul.u32 16, %s23
        %p250 = scmp.lt.s32.totalorder %s249, 31
        %s251 = scalar_select %p250, %s249, 31
        %s252 = smul.addr %s251, 8
        %s253 = scalar_lea.vmem %s0, %s252
        %p254 = pneg %p44
        %p255 = pneg %p41
        %p256 = pneg %p65
        %p257 = pneg %p62
        %p258 = pneg %p86
        %p259 = pneg %p83
        %p260 = pneg %p107
        %p261 = pneg %p104
        %p262 = pneg %p128
        %p263 = pneg %p125
        %p264 = pneg %p149
        %p265 = pneg %p146
        %p266 = pneg %p170
        %p267 = pneg %p167
        %p268 = pneg %p196
        %p269 = pneg %p193
        %s270 = sand.u32 %s183, 1
        %s271 = scalar_lea.sflag [#allocation4], %s270
        %s272 = sand.u32 %s183, 1
        %s273 = scalar_lea.vmem [#allocation3], %s272
        %s274 = smul.u32 16, %s23
        %p275 = scmp.lt.s32.totalorder %s274, 31
        %s276 = scalar_select %p275, %s274, 31
        %s277 = smul.addr %s276, 8
        %s278 = scalar_lea.vmem %s0, %s277
        %s279 = smul.u32 16, %s23
        %v281 = vld [vmem:[%s278] sm:$0xff]
        %v282 = vld [vmem:[%s278 + $0x8] sm:$0xff]
        %v283 = vld [vmem:[%s278 + $0x10] sm:$0xff]
        %v284 = vld [vmem:[%s278 + $0x18] sm:$0xff]
        %v285 = vld [vmem:[%s278 + $0x20] sm:$0xff]
        %v286 = vld [vmem:[%s278 + $0x28] sm:$0xff]
        %v287 = vld [vmem:[%s278 + $0x30] sm:$0xff]
        %v288 = vld [vmem:[%s278 + $0x38] sm:$0xff]
        %v289 = vld [vmem:[%s278 + $0x40] sm:$0xff]
        %v290 = vld [vmem:[%s278 + $0x48] sm:$0xff]
        %v291 = vld [vmem:[%s278 + $0x50] sm:$0xff]
        %v292 = vld [vmem:[%s278 + $0x58] sm:$0xff]
        %v293 = vld [vmem:[%s278 + $0x60] sm:$0xff]
        %v294 = vld [vmem:[%s278 + $0x68] sm:$0xff]
        %v295 = vld [vmem:[%s278 + $0x70] sm:$0xff]
        %v296 = vld [vmem:[%s278 + $0x78] sm:$0xff]
        %v297 = vpack.c.bf16 %v282, %v281
        %v298 = vpack.c.bf16 %v284, %v283
        %v299 = vpack.c.bf16 %v286, %v285
        %v300 = vpack.c.bf16 %v288, %v287
        %v301 = vpack.c.bf16 %v290, %v289
        %v302 = vpack.c.bf16 %v292, %v291
        %v303 = vpack.c.bf16 %v294, %v293
        %v304 = vpack.c.bf16 %v296, %v295
        %v305 = vld [vmem:[%s1] sm:$0xf]
        %v306 = vld [vmem:[%s1 + $0x4] sm:$0xf]
        %v307 = vld [vmem:[%s1 + $0x8] sm:$0xf]
        %v308 = vld [vmem:[%s1 + $0xc] sm:$0xf]
        %v309 = vld [vmem:[%s2] sm:$0x1]
        %v311 = vperm.slane %v309, 0
        %v317 = vunpack.c.l.b16 %v305
        %v318 = vunpack.c.l.b16 %v306
        %v319 = vunpack.c.l.b16 %v307
        %v320 = vunpack.c.l.b16 %v308
        %v321 = vpack.c.b16 %v318, %v317
        %v322 = vpack.c.b16 %v320, %v319
        %vm325 = vcmask 261120
        %v327 = vsel %vm325, %v297, 0
        %v330 = vsel %vm325, %v298, 0
        %v333 = vsel %vm325, %v299, 0
        %v336 = vsel %vm325, %v300, 0
        %v339 = vsel %vm325, %v301, 0
        %v342 = vsel %vm325, %v302, 0
        %v345 = vsel %vm325, %v303, 0
        %v348 = vsel %vm325, %v304, 0
        %350 = vmatpush.bf16.msra.mxu0 0
        %351 = vmatpush.bf16.msra.mxu0 0
        %352 = vmatpush.bf16.msra.mxu0 0
        %353 = vmatpush.bf16.msra.mxu0 0
        %354 = vmatpush.bf16.msra.mxu0 0
        %355 = vmatpush.bf16.msra.mxu0 0
        %356 = vmatpush.bf16.msra.mxu0 %v322
        %357 = vmatpush.bf16.msra.mxu0 %v321
        %358 = vmatmul.bf16.gmra.mxu0 %v327
        %v359 = vpop.f32.mrf.mxu0
        %v360 = vadd.f32 %v311, %v359
        %v361 = vpop.f32.mrf.mxu0
        %v362 = vadd.f32 %v311, %v361
        %363 = vmatmul.bf16.gmra.mxu0 %v330
        %v364 = vpop.f32.mrf.mxu0
        %v365 = vadd.f32 %v311, %v364
        %v366 = vpop.f32.mrf.mxu0
        %v367 = vadd.f32 %v311, %v366
        %368 = vmatmul.bf16.gmra.mxu0 %v333
        %v369 = vpop.f32.mrf.mxu0
        %v370 = vadd.f32 %v311, %v369
        %v371 = vpop.f32.mrf.mxu0
        %v372 = vadd.f32 %v311, %v371
        %373 = vmatmul.bf16.gmra.mxu0 %v336
        %v374 = vpop.f32.mrf.mxu0
        %v375 = vadd.f32 %v311, %v374
        %v376 = vpop.f32.mrf.mxu0
        %v377 = vadd.f32 %v311, %v376
        %378 = vmatmul.bf16.gmra.mxu0 %v339
        %v379 = vpop.f32.mrf.mxu0
        %v380 = vadd.f32 %v311, %v379
        %v381 = vpop.f32.mrf.mxu0
        %v382 = vadd.f32 %v311, %v381
        %383 = vmatmul.bf16.gmra.mxu0 %v342
        %v384 = vpop.f32.mrf.mxu0
        %v385 = vadd.f32 %v311, %v384
        %v386 = vpop.f32.mrf.mxu0
        %v387 = vadd.f32 %v311, %v386
        %388 = vmatmul.bf16.gmra.mxu0 %v345
        %v389 = vpop.f32.mrf.mxu0
        %v390 = vadd.f32 %v311, %v389
        %v391 = vpop.f32.mrf.mxu0
        %v392 = vadd.f32 %v311, %v391
        %393 = vmatmul.bf16.gmra.mxu0 %v348
        %v394 = vpop.f32.mrf.mxu0
        %v395 = vadd.f32 %v311, %v394
        %v396 = vpop.f32.mrf.mxu0
        %v397 = vadd.f32 %v311, %v396
        %398 = vdwg.mxu0
        %v399 = vmax.f32 %v360, 0.0
        %v400 = vmax.f32 %v362, 0.0
        %v401 = vmax.f32 %v365, 0.0
        %v402 = vmax.f32 %v367, 0.0
        %v403 = vmax.f32 %v370, 0.0
        %v404 = vmax.f32 %v372, 0.0
        %v405 = vmax.f32 %v375, 0.0
        %v406 = vmax.f32 %v377, 0.0
        %v407 = vmax.f32 %v380, 0.0
        %v408 = vmax.f32 %v382, 0.0
        %v409 = vmax.f32 %v385, 0.0
        %v410 = vmax.f32 %v387, 0.0
        %v411 = vmax.f32 %v390, 0.0
        %v412 = vmax.f32 %v392, 0.0
        %v413 = vmax.f32 %v395, 0.0
        %v414 = vmax.f32 %v397, 0.0
        %v415 = vpack.c.bf16 %v400, %v399
        %v416 = vpack.c.bf16 %v402, %v401
        %v417 = vpack.c.bf16 %v404, %v403
        %v418 = vpack.c.bf16 %v406, %v405
        %v419 = vpack.c.bf16 %v408, %v407
        %v420 = vpack.c.bf16 %v410, %v409
        %v421 = vpack.c.bf16 %v412, %v411
        %v422 = vpack.c.bf16 %v414, %v413
        %v423 = vld [vmem:[%s3] sm:$0xf]
        %v424 = vld [vmem:[%s3 + $0x4] sm:$0xf]
        %v425 = vld [vmem:[%s3 + $0x8] sm:$0xf]
        %v426 = vld [vmem:[%s3 + $0xc] sm:$0xf]
        %v427 = vld [vmem:[%s4] sm:$0x1]
        %v429 = vperm.slane %v427, 0
        %v435 = vunpack.c.l.b16 %v423
        %v436 = vunpack.c.l.b16 %v424
        %v437 = vunpack.c.l.b16 %v425
        %v438 = vunpack.c.l.b16 %v426
        %v439 = vpack.c.b16 %v436, %v435
        %v440 = vpack.c.b16 %v438, %v437
        %v444 = vsel %vm325, %v415, 0
        %v447 = vsel %vm325, %v416, 0
        %v450 = vsel %vm325, %v417, 0
        %v453 = vsel %vm325, %v418, 0
        %v456 = vsel %vm325, %v419, 0
        %v459 = vsel %vm325, %v420, 0
        %v462 = vsel %vm325, %v421, 0
        %v465 = vsel %vm325, %v422, 0
        %467 = vmatpush.bf16.msra.mxu0 0
        %468 = vmatpush.bf16.msra.mxu0 0
        %469 = vmatpush.bf16.msra.mxu0 0
        %470 = vmatpush.bf16.msra.mxu0 0
        %471 = vmatpush.bf16.msra.mxu0 0
        %472 = vmatpush.bf16.msra.mxu0 0
        %473 = vmatpush.bf16.msra.mxu0 %v440
        %474 = vmatpush.bf16.msra.mxu0 %v439
        %475 = vmatmul.bf16.gmra.mxu0 %v444
        %v476 = vpop.f32.mrf.mxu0
        %v477 = vadd.f32 %v429, %v476
        %v478 = vpop.f32.mrf.mxu0
        %v479 = vadd.f32 %v429, %v478
        %480 = vmatmul.bf16.gmra.mxu0 %v447
        %v481 = vpop.f32.mrf.mxu0
        %v482 = vadd.f32 %v429, %v481
        %v483 = vpop.f32.mrf.mxu0
        %v484 = vadd.f32 %v429, %v483
        %485 = vmatmul.bf16.gmra.mxu0 %v450
        %v486 = vpop.f32.mrf.mxu0
        %v487 = vadd.f32 %v429, %v486
        %v488 = vpop.f32.mrf.mxu0
        %v489 = vadd.f32 %v429, %v488
        %490 = vmatmul.bf16.gmra.mxu0 %v453
        %v491 = vpop.f32.mrf.mxu0
        %v492 = vadd.f32 %v429, %v491
        %v493 = vpop.f32.mrf.mxu0
        %v494 = vadd.f32 %v429, %v493
        %495 = vmatmul.bf16.gmra.mxu0 %v456
        %v496 = vpop.f32.mrf.mxu0
        %v497 = vadd.f32 %v429, %v496
        %v498 = vpop.f32.mrf.mxu0
        %v499 = vadd.f32 %v429, %v498
        %500 = vmatmul.bf16.gmra.mxu0 %v459
        %v501 = vpop.f32.mrf.mxu0
        %v502 = vadd.f32 %v429, %v501
        %v503 = vpop.f32.mrf.mxu0
        %v504 = vadd.f32 %v429, %v503
        %505 = vmatmul.bf16.gmra.mxu0 %v462
        %v506 = vpop.f32.mrf.mxu0
        %v507 = vadd.f32 %v429, %v506
        %v508 = vpop.f32.mrf.mxu0
        %v509 = vadd.f32 %v429, %v508
        %510 = vmatmul.bf16.gmra.mxu0 %v465
        %v511 = vpop.f32.mrf.mxu0
        %v512 = vadd.f32 %v429, %v511
        %v513 = vpop.f32.mrf.mxu0
        %v514 = vadd.f32 %v429, %v513
        %515 = vdwg.mxu0
        %v516 = vmax.f32 %v477, 0.0
        %v517 = vmax.f32 %v479, 0.0
        %v518 = vmax.f32 %v482, 0.0
        %v519 = vmax.f32 %v484, 0.0
        %v520 = vmax.f32 %v487, 0.0
        %v521 = vmax.f32 %v489, 0.0
        %v522 = vmax.f32 %v492, 0.0
        %v523 = vmax.f32 %v494, 0.0
        %v524 = vmax.f32 %v497, 0.0
        %v525 = vmax.f32 %v499, 0.0
        %v526 = vmax.f32 %v502, 0.0
        %v527 = vmax.f32 %v504, 0.0
        %v528 = vmax.f32 %v507, 0.0
        %v529 = vmax.f32 %v509, 0.0
        %v530 = vmax.f32 %v512, 0.0
        %v531 = vmax.f32 %v514, 0.0
        %v532 = vpack.c.bf16 %v517, %v516
        %v533 = vpack.c.bf16 %v519, %v518
        %v534 = vpack.c.bf16 %v521, %v520
        %v535 = vpack.c.bf16 %v523, %v522
        %v536 = vpack.c.bf16 %v525, %v524
        %v537 = vpack.c.bf16 %v527, %v526
        %v538 = vpack.c.bf16 %v529, %v528
        %v539 = vpack.c.bf16 %v531, %v530
        %v540 = vld [vmem:[%s5] sm:$0x1]
        %v541 = vld [vmem:[#allocation2] sm:$0x1]
        %543 = vset.pattern.permute.xlu0 0
        %544 = vperm.xlu0 %543, %v541
        %v545 = vpop.permute.xlu0 %544
        %v547 = vperm.slane %v545, 0
        %v549 = vsel %vm325, %v540, 0
        %v552 = vsel %vm325, %v532, 0
        %v555 = vsel %vm325, %v533, 0
        %v558 = vsel %vm325, %v534, 0
        %v561 = vsel %vm325, %v535, 0
        %v564 = vsel %vm325, %v536, 0
        %v567 = vsel %vm325, %v537, 0
        %v570 = vsel %vm325, %v538, 0
        %v573 = vsel %vm325, %v539, 0
        %575 = vmatpush.bf16.xpose.msra.mxu0 %v573
        %576 = vmatpush.bf16.xpose.msra.mxu0 %v570
        %577 = vmatpush.bf16.xpose.msra.mxu0 %v567
        %578 = vmatpush.bf16.xpose.msra.mxu0 %v564
        %579 = vmatpush.bf16.xpose.msra.mxu0 %v561
        %580 = vmatpush.bf16.xpose.msra.mxu0 %v558
        %581 = vmatpush.bf16.xpose.msra.mxu0 %v555
        %582 = vmatpush.bf16.xpose.msra.mxu0 %v552
        %583 = vmatmul.bf16.gmra.mxu0 %v549
        %v584 = vpop.f32.mrf.mxu0
        %v585 = vadd.f32 %v547, %v584
        %v586 = vpop.f32.mrf.mxu0
        %587 = vdwg.mxu0
        %588 = vst [vmem:[%s273] sm:$0x1] %v585
        %s589 = sand.u32 %s183, 1
        %s590 = scalar_lea.sflag [#allocation4], %s589
        %s591 = sand.u32 %s183, 1
        %s592 = scalar_lea.vmem [#allocation3], %s591
        // Predicated region
        $region49: #{tpu_custom_call.1} parent=47 // pred_check
          %p593 = pneg %p193
        $region50: #{tpu_custom_call.1} parent=47 // pred_check_branch
          %595 = sbr.rel (%p593) target = $region52
        $region51: #{tpu_custom_call.1} parent=47 // pred_region
          %597 = vsyncadd %s590, 0
          %s598 = scalar_lea.hbm %s7, %s23
          %s600 = sshll.u32 %s592, 4
          %s601 = int_to_ptr.vmem [resolvable:$true] %s600
          %s602 = sshll.u32 %s598, 4
          %s603 = int_to_ptr.hbm [resolvable:$true] %s602
          %605 = dma.vmem_to_hbm [thread:$0]  %s601, 16, %s603, %s590
        $region52: #{tpu_custom_call.1} parent=47 // pred_fallthru
          _
      $region48: #{tpu_custom_call.1} parent=5 // pred_fallthru
        _
      %p606 = scmp.le.s32.totalorder 2, %s18
      // Predicated region
      $region53: #{tpu_custom_call.1} parent=5 // pred_check
        %p607 = pneg %p606
      $region54: #{tpu_custom_call.1} parent=5 // pred_check_branch
        %609 = sbr.rel (%p607) target = $region56
      $region55: #{tpu_custom_call.1} parent=5 // pred_region
        %s610 = ssub.s32 %s18, 2
        // Predicated region
        $region57: #{tpu_custom_call.1} parent=55 // pred_check
          %p611 = pneg %p199
        $region58: #{tpu_custom_call.1} parent=55 // pred_check_branch
          %613 = sbr.rel (%p611) target = $region60
        $region59: #{tpu_custom_call.1} parent=55 // pred_region
          %s614 = sand.u32 %s184, 1
          %s615 = scalar_lea.sflag [#allocation4], %s614
          %s616 = sand.u32 %s184, 1
          %s617 = scalar_lea.vmem [#allocation3], %s616
          %619 = dma.done %s615, 16
        $region60: #{tpu_custom_call.1} parent=55 // pred_fallthru
          _
      $region56: #{tpu_custom_call.1} parent=5 // pred_fallthru
        _
    $region6: #{tpu_custom_call.1} parent=1 // loop_footer
      %s22 = sadd.s32 1, %s18
    $region7: #{tpu_custom_call.1} parent=1 // loop_footer_branch
      %17 = sbr.rel target = $region3
    $region8: #{tpu_custom_call.1} parent=1 // loop_exit
      _
    %620 = vsyncpa [#allocation4], 1
    %s621 = scalar_lea.sflag [#allocation4], 1
    %622 = vsyncpa %s621, 1

</llo_original>
